<compile_context>
chip_gen: v6e
topology: v6e:2x2x1
jax: 0.10.0
libtpu: 0.0.40
codegen_flags: <defaults>
</compile_context>

<pallas_src>
import functools

import jax
import jax.numpy as jnp
from jax.experimental import pallas as pl
from jax.experimental.pallas import tpu as pltpu


def _round_up(a, b):
    return (a + b - 1) // b * b


# ----------------------------------------------------------------------------
# Kernels.
#   grid = (row tiles i [parallel], reduction tiles k [arbitrary, last])
#   out[i] = R[i] + sum_k M_sum[i, k] @ H1[k]
# The output block index map is constant in k, so o_ref stays VMEM-resident
# and is accumulated directly (no scratch accumulator).
# ----------------------------------------------------------------------------
def _resident_kernel(tile_k, h1_ref, m_ref, root_ref, o_ref):
    """H1 fully VMEM-resident; slice the k-panel in-kernel."""
    k = pl.program_id(1)

    @pl.when(k == 0)
    def _init():
        o_ref[...] = root_ref[...]

    start = pl.multiple_of(k * tile_k, tile_k)
    o_ref[...] += jnp.dot(
        m_ref[...], h1_ref[pl.ds(start, tile_k), :],
        preferred_element_type=jnp.float32,
    )


def _recompute_kernel(x_ref, m_ref, w1t_ref, root_ref, o_ref):
    """Fallback for graphs where resident H1 would not fit VMEM."""
    k = pl.program_id(1)

    @pl.when(k == 0)
    def _init():
        o_ref[...] = root_ref[...]

    h1 = jnp.dot(
        x_ref[...], w1t_ref[...], preferred_element_type=jnp.float32
    ).astype(jnp.bfloat16)
    o_ref[...] += jnp.dot(m_ref[...], h1, preferred_element_type=jnp.float32)


# ----------------------------------------------------------------------------
# Fused normalized-adjacency build (wrapper side, single scatter pass).
# Uses 2-D scatter indices -> no N*N flat int32 index (no overflow for big N)
# and no separate cnt / scaled-sum temporaries.
# ----------------------------------------------------------------------------
def _build_msum(src, dst, num_nodes, n_pad):
    e = src.shape[0]
    ones = jnp.ones((e,), jnp.float32)
    deg_in = jnp.zeros((num_nodes,), jnp.float32).at[dst].add(ones)
    deg_out = jnp.zeros((num_nodes,), jnp.float32).at[src].add(ones)
    inv_in = 1.0 / jnp.maximum(deg_in, 1.0)
    inv_out = 1.0 / jnp.maximum(deg_out, 1.0)

    m = jnp.zeros((n_pad, n_pad), jnp.float32)
    m = m.at[dst, src].add(inv_in[dst])     # src -> dst direction (scatter-mean)
    m = m.at[src, dst].add(inv_out[src])    # dst -> src direction (scatter-mean)
    return m.astype(jnp.bfloat16)


# ----------------------------------------------------------------------------
# Wrapper.
# ----------------------------------------------------------------------------
def relconv_forward(x, edge_index, w1, w_root, b_root):
    """x: [N, Cin] f32, edge_index: [2, E] int32 -> [N, Cout] f32."""
    num_nodes, in_ch = x.shape
    out_ch = w1.shape[0]
    cout_pad = _round_up(out_ch, 128)   # keep at 128: lane-dense, no over-pad

    # Independent row / reduction tile sizes.  The kernel is HBM-bound on the
    # bf16 M_sum stream, so tile_k is pushed to 1024 on large graphs.
    if num_nodes <= 1024:
        n_pad = _round_up(num_nodes, 128)
        tile_m = n_pad
        tile_k = n_pad
    else:
        tile_m = 512
        tile_k = 1024
        n_pad = _round_up(num_nodes, 1024)

    src, dst = edge_index[0], edge_index[1]
    m_sum = _build_msum(src, dst, num_nodes, n_pad)

    # Root term hoisted out of the kernel's hot loop (tiny XLA matmul).
    root = (x @ w_root.T + b_root[None, :]).astype(jnp.float32)
    root = jnp.pad(root, ((0, n_pad - num_nodes), (0, cout_pad - out_ch)))

    grid = (n_pad // tile_m, n_pad // tile_k)
    grid_k = grid[1]

    # M_sum is the only large streamed operand; deepen its pipeline when the
    # reduction grid is long enough for a third buffer to matter.
    if grid_k >= 3:
        m_spec = pl.BlockSpec((tile_m, tile_k), lambda i, k: (i, k),
                              pipeline_mode=pl.Buffered(3))
        m_bufs = 3
    else:
        m_spec = pl.BlockSpec((tile_m, tile_k), lambda i, k: (i, k))
        m_bufs = 2

    root_spec = pl.BlockSpec((tile_m, cout_pad), lambda i, k: (i, 0))
    out_spec = pl.BlockSpec((tile_m, cout_pad), lambda i, k: (i, 0))

    compiler_params = pltpu.CompilerParams(
        dimension_semantics=("parallel", "arbitrary"),
        vmem_limit_bytes=48 << 20,   # v7x-safe (64 MiB physical)
    )

    # Resident-H1 vs recompute decision, sized against a v7x-safe VMEM budget.
    h1_bytes = 2 * n_pad * cout_pad * 2                 # bf16, assume 2 bufs
    m_bytes = m_bufs * tile_m * tile_k * 2              # bf16 M tiles
    io_bytes = 2 * 2 * tile_m * cout_pad * 4            # out + root f32 blocks
    resident_ok = (h1_bytes + m_bytes + io_bytes) < (40 << 20)

    if resident_ok:
        h1 = jnp.pad(x @ w1.T, ((0, n_pad - num_nodes), (0, cout_pad - out_ch)))
        h1 = h1.astype(jnp.bfloat16)
        kernel = functools.partial(_resident_kernel, tile_k)
        in_specs = [
            pl.BlockSpec((n_pad, cout_pad), lambda i, k: (0, 0)),   # H1 resident
            m_spec,
            root_spec,
        ]
        operands = (h1, m_sum, root)
    else:
        x_pad = jnp.pad(x, ((0, n_pad - num_nodes), (0, 0))).astype(jnp.bfloat16)
        w1t = jnp.pad(w1.T, ((0, 0), (0, cout_pad - out_ch))).astype(jnp.bfloat16)
        kernel = _recompute_kernel
        in_specs = [
            pl.BlockSpec((tile_k, in_ch), lambda i, k: (k, 0)),     # x k-panel
            m_spec,
            pl.BlockSpec((in_ch, cout_pad), lambda i, k: (0, 0)),   # W1^T resident
            root_spec,
        ]
        operands = (x_pad, m_sum, w1t, root)

    out = pl.pallas_call(
        kernel,
        out_shape=jax.ShapeDtypeStruct((n_pad, cout_pad), jnp.float32),
        grid=grid,
        in_specs=in_specs,
        out_specs=out_spec,
        compiler_params=compiler_params,
    )(*operands)

    return out[:num_nodes, :out_ch]


# ----------------------------------------------------------------------------
# Pure-JAX reference (f32), deterministic init, example run + self-check.
# ----------------------------------------------------------------------------
def reference_forward(x, edge_index, w1, w_root, b_root):
    source, target = edge_index[0], edge_index[1]
    n = x.shape[0]

    def propagate(src, dst):
        h = x @ w1.T
        msgs = h[src]
        summed = jax.ops.segment_sum(msgs, dst, num_segments=n)
        count = jax.ops.segment_sum(jnp.ones_like(msgs[:, 0]), dst, num_segments=n)
        return summed / jnp.maximum(count, 1.0)[:, None]

    return (x @ w_root.T + b_root) + propagate(source, target) + propagate(target, source)


def xavier_uniform(key, shape):
    fan_out, fan_in = shape
    bound = (6.0 / (fan_in + fan_out)) ** 0.5
    return jax.random.uniform(key, shape, jnp.float32, -bound, bound)


if __name__ == "__main__":
    in_channels, out_channels = 8, 8
    num_nodes, num_edges = 16, 24

    key = jax.random.PRNGKey(0)
    k_x, k_e, k_w1, k_w2, k_wr = jax.random.split(key, 5)

    x = jax.random.normal(k_x, (num_nodes, in_channels), jnp.float32)
    edge_index = jax.random.randint(k_e, (2, num_edges), 0, num_nodes, jnp.int32)

    w1 = xavier_uniform(k_w1, (out_channels, in_channels))      # lin1.weight
    _w2 = xavier_uniform(k_w2, (out_channels, in_channels))     # lin2.weight (unused in forward)
    w_root = xavier_uniform(k_wr, (out_channels, in_channels))  # root.weight
    b_root = jnp.zeros((out_channels,), jnp.float32)            # root.bias

    out = relconv_forward(x, edge_index, w1, w_root, b_root)
    out = jax.block_until_ready(out)

    ref = reference_forward(x, edge_index, w1, w_root, b_root)
    assert out.shape == (num_nodes, out_channels)
    assert jnp.allclose(out, ref, atol=5e-2, rtol=5e-2), "mismatch vs reference"

    print("KERNEL_OK")
</pallas_src>

<mosaic_0001>
module attributes {stable_mosaic.version = 11 : i64} {
  func.func @_resident_kernel(%arg0: i32, %arg1: i32, %arg2: memref<128x128xbf16, #tpu.memory_space<vmem>>, %arg3: memref<128x128xbf16, #tpu.memory_space<vmem>>, %arg4: memref<128x128xf32, #tpu.memory_space<vmem>>, %arg5: memref<128x128xf32, #tpu.memory_space<vmem>>) attributes {dimension_semantics = [#tpu.dimension_semantics<parallel>, #tpu.dimension_semantics<arbitrary>], iteration_bounds = array<i64: 1, 1>, scalar_prefetch = 0 : i64, scratch_operands = 0 : i64, tpu.core_type = #tpu.core_type<tc>, window_params = [{pipeline_mode = #tpu.pipeline_mode<synchronous>, transform_indices = @transform_0, window_bounds = array<i64: 128, 128>}, {transform_indices = @transform_1, window_bounds = array<i64: 128, 128>}, {transform_indices = @transform_2, window_bounds = array<i64: 128, 128>}, {transform_indices = @transform_3, window_bounds = array<i64: 128, 128>}]} {
    %c0_i32 = arith.constant 0 : i32
    %0 = arith.cmpi eq, %arg1, %c0_i32 : i32
    %1 = arith.extui %0 : i1 to i32
    %c0_i32_0 = arith.constant 0 : i32
    %2 = arith.cmpi ne, %1, %c0_i32_0 : i32
    scf.if %2 {
      %c0_7 = arith.constant 0 : index
      %c0_8 = arith.constant 0 : index
      %12 = vector.load %arg4[%c0_7, %c0_8] : memref<128x128xf32, #tpu.memory_space<vmem>>, vector<128x128xf32>
      %c0_9 = arith.constant 0 : index
      %c0_10 = arith.constant 0 : index
      %13 = vector.load %arg5[%c0_9, %c0_10] : memref<128x128xf32, #tpu.memory_space<vmem>>, vector<128x128xf32>
      tpu.vector_store %arg5[%c0_9, %c0_10], %12 {strides = array<i32>} : memref<128x128xf32, #tpu.memory_space<vmem>>, vector<128x128xf32>,
    } else {
    }
    %c128_i32 = arith.constant 128 : i32
    %3 = arith.muli %arg1, %c128_i32 : i32
    %4 = tpu.assume_multiple %3, 128 : i32
    %c0 = arith.constant 0 : index
    %c0_1 = arith.constant 0 : index
    %5 = vector.load %arg5[%c0, %c0_1] : memref<128x128xf32, #tpu.memory_space<vmem>>, vector<128x128xf32>
    %c0_2 = arith.constant 0 : index
    %c0_3 = arith.constant 0 : index
    %6 = vector.load %arg3[%c0_2, %c0_3] : memref<128x128xbf16, #tpu.memory_space<vmem>>, vector<128x128xbf16>
    %7 = arith.index_cast %4 : i32 to index
    %c0_4 = arith.constant 0 : index
    %8 = vector.load %arg2[%7, %c0_4] : memref<128x128xbf16, #tpu.memory_space<vmem>>, vector<128x128xbf16>
    %cst = arith.constant dense<0.000000e+00> : vector<128x128xf32>
    %9 = tpu.matmul %6, %8, %cst {dimension_numbers = #tpu.dot_dimension_numbers<[1], [0], [0], [1], [0, 0, 1, 1], [], []>} : vector<128x128xbf16>, vector<128x128xbf16>, vector<128x128xf32> -> vector<128x128xf32>
    %10 = arith.addf %5, %9 : vector<128x128xf32>
    %c0_5 = arith.constant 0 : index
    %c0_6 = arith.constant 0 : index
    %11 = vector.load %arg5[%c0_5, %c0_6] : memref<128x128xf32, #tpu.memory_space<vmem>>, vector<128x128xf32>
    tpu.vector_store %arg5[%c0_5, %c0_6], %10 {strides = array<i32>} : memref<128x128xf32, #tpu.memory_space<vmem>>, vector<128x128xf32>,
    return
  }
  func.func @transform_0(%arg0: i32, %arg1: i32) -> (i32, i32) {
    %c0_i32 = arith.constant 0 : i32
    %c0_i32_0 = arith.constant 0 : i32
    %c0_i32_1 = arith.constant 0 : i32
    return %c0_i32, %c0_i32_0 : i32, i32
  }
  func.func @transform_1(%arg0: i32, %arg1: i32) -> (i32, i32) {
    %c0_i32 = arith.constant 0 : i32
    return %arg0, %arg1 : i32, i32
  }
  func.func @transform_2(%arg0: i32, %arg1: i32) -> (i32, i32) {
    %c0_i32 = arith.constant 0 : i32
    %c0_i32_0 = arith.constant 0 : i32
    return %arg0, %c0_i32 : i32, i32
  }
  func.func @transform_3(%arg0: i32, %arg1: i32) -> (i32, i32) {
    %c0_i32 = arith.constant 0 : i32
    %c0_i32_0 = arith.constant 0 : i32
    return %arg0, %c0_i32 : i32, i32
  }
}

</mosaic_0001>

<llo_original>
// kernel: tpu_custom_call.1
$region0: #{tpu_custom_call.1}
  #allocation0 [shape = 'u32[]', space=smem, size = 0x4, offset = 0x4, fixed_abs, tag = 'smem constant byte address 0x4 - core index']
  #allocation1 [shape = 'u32[144,128]{1,0:T(1,128)}', space=vmem, size = 0x12000, scoped, tag = 'internal scratch']
  %s0 = inlined_call_operand.hbm [shape: bf16[128,128], index: 0, kind: input, shape index: {}]
  %s1 = inlined_call_operand.hbm [shape: bf16[128,128], index: 1, kind: input, shape index: {}]
  %s2 = inlined_call_operand.hbm [shape: f32[128,128], index: 2, kind: input, shape index: {}]
  %s3 = inlined_call_operand.hbm [shape: f32[128,128], index: 3, kind: output, shape index: {}]
  %s4 = sld [smem:[#allocation0]]
  $region38: #{tpu_custom_call.1} parent=0
    _
  %s6 = ssub.s32 1, %s4
  %s7 = scalar_select 0, %s6, %s4
  $region1: #{tpu_custom_call.1} parent=0
    #allocation2 [shape = 'u8[32768]{0}', space=vmem, size = 0x8000, scoped, tag = 'input window, operand 0, single buffered']
    #allocation3 [shape = 's32[1]{0}', space=sflag, size = 0x4, scoped, tag = 'scoped memory for tpu_custom_call.1']
    #allocation4 [shape = 's32[1]{0}', space=sflag, size = 0x4, scoped, tag = 'scoped memory for tpu_custom_call.1']
    #allocation5 [shape = 'u8[32768]{0}', space=vmem, size = 0x8000, scoped, tag = 'input window, operand 1, single buffered']
    #allocation6 [shape = 's32[1]{0}', space=sflag, size = 0x4, scoped, tag = 'scoped memory for tpu_custom_call.1']
    #allocation7 [shape = 'u8[65536]{0}', space=vmem, size = 0x10000, scoped, tag = 'input window, operand 2, single buffered']
    #allocation8 [shape = 'u8[65536]{0}', space=vmem, size = 0x10000, scoped, tag = 'output window, operand 0, single buffered']
    %8 = vsyncpa [#allocation3], 0
    %9 = vsyncpa [#allocation6], 0
    %10 = vsyncpa [#allocation4], 0
    // Predicated region
    $region2: #{tpu_custom_call.1} parent=1 // pred_check
      _
    $region3: #{tpu_custom_call.1} parent=1 // pred_check_branch
      %12 = sbr.rel (0) target = $region5
    $region4: #{tpu_custom_call.1} parent=1 // pred_region
      %s14 = ssub.s32 1024, 1024
      %15 = vsyncadd [#allocation3], %s14
      %s16 = sshll.u32 [#allocation2], 4
      %s17 = int_to_ptr.vmem [resolvable:$true] %s16
      %22 = dma.hbm_to_vmem [thread:$0]  %s0, 1024, %s17, [#allocation3], 64, 64, 4
    $region5: #{tpu_custom_call.1} parent=1 // pred_fallthru
      _
    // Predicated region
    $region6: #{tpu_custom_call.1} parent=1 // pred_check
      _
    $region7: #{tpu_custom_call.1} parent=1 // pred_check_branch
      %24 = sbr.rel (0) target = $region9
    $region8: #{tpu_custom_call.1} parent=1 // pred_region
      %s26 = ssub.s32 1024, 1024
      %27 = vsyncadd [#allocation6], %s26
      %s28 = sshll.u32 [#allocation5], 4
      %s29 = int_to_ptr.vmem [resolvable:$true] %s28
      %34 = dma.hbm_to_vmem [thread:$0]  %s1, 1024, %s29, [#allocation6], 64, 64, 4
    $region9: #{tpu_custom_call.1} parent=1 // pred_fallthru
      _
    // Predicated region
    $region10: #{tpu_custom_call.1} parent=1 // pred_check
      _
    $region11: #{tpu_custom_call.1} parent=1 // pred_check_branch
      %36 = sbr.rel (0) target = $region13
    $region12: #{tpu_custom_call.1} parent=1 // pred_region
      %s38 = ssub.s32 2048, 2048
      %39 = vsyncadd [#allocation6], %s38
      %s40 = sshll.u32 [#allocation7], 4
      %s41 = int_to_ptr.vmem [resolvable:$true] %s40
      %46 = dma.hbm_to_vmem [thread:$0]  %s2, 2048, %s41, [#allocation6], 128, 128, 8
    $region13: #{tpu_custom_call.1} parent=1 // pred_fallthru
      _
    // Predicated region
    $region14: #{tpu_custom_call.1} parent=1 // pred_check
      _
    $region15: #{tpu_custom_call.1} parent=1 // pred_check_branch
      %48 = sbr.rel (0) target = $region17
    $region16: #{tpu_custom_call.1} parent=1 // pred_region
      %49 = dma.done [#allocation3], 1024
    $region17: #{tpu_custom_call.1} parent=1 // pred_fallthru
      _
    // Predicated region
    $region18: #{tpu_custom_call.1} parent=1 // pred_check
      _
    $region19: #{tpu_custom_call.1} parent=1 // pred_check_branch
      %51 = sbr.rel (0) target = $region21
    $region20: #{tpu_custom_call.1} parent=1 // pred_region
      %52 = dma.done [#allocation6], 1024
    $region21: #{tpu_custom_call.1} parent=1 // pred_fallthru
      _
    // Predicated region
    $region22: #{tpu_custom_call.1} parent=1 // pred_check
      _
    $region23: #{tpu_custom_call.1} parent=1 // pred_check_branch
      %54 = sbr.rel (0) target = $region25
    $region24: #{tpu_custom_call.1} parent=1 // pred_region
      %55 = dma.done [#allocation6], 2048
    $region25: #{tpu_custom_call.1} parent=1 // pred_fallthru
      _
    %p57 = scmp.eq.s32.totalorder 0, 0
    // Predicated region
    $region26: #{tpu_custom_call.1} parent=1 // pred_check
      %p58 = pneg %p57
    $region27: #{tpu_custom_call.1} parent=1 // pred_check_branch
      %60 = sbr.rel (%p58) target = $region29
    $region28: #{tpu_custom_call.1} parent=1 // pred_region
      %v61 = vld [vmem:[#allocation7] sm:$0xff]
      %v62 = vld [vmem:[#allocation7 + $0x8] sm:$0xff]
      %v63 = vld [vmem:[#allocation7 + $0x10] sm:$0xff]
      %v64 = vld [vmem:[#allocation7 + $0x18] sm:$0xff]
      %v65 = vld [vmem:[#allocation7 + $0x20] sm:$0xff]
      %v66 = vld [vmem:[#allocation7 + $0x28] sm:$0xff]
      %v67 = vld [vmem:[#allocation7 + $0x30] sm:$0xff]
      %v68 = vld [vmem:[#allocation7 + $0x38] sm:$0xff]
      %v69 = vld [vmem:[#allocation7 + $0x40] sm:$0xff]
      %v70 = vld [vmem:[#allocation7 + $0x48] sm:$0xff]
      %v71 = vld [vmem:[#allocation7 + $0x50] sm:$0xff]
      %v72 = vld [vmem:[#allocation7 + $0x58] sm:$0xff]
      %v73 = vld [vmem:[#allocation7 + $0x60] sm:$0xff]
      %v74 = vld [vmem:[#allocation7 + $0x68] sm:$0xff]
      %v75 = vld [vmem:[#allocation7 + $0x70] sm:$0xff]
      %v76 = vld [vmem:[#allocation7 + $0x78] sm:$0xff]
      %77 = vst [vmem:[#allocation8] sm:$0xff] %v61
      %78 = vst [vmem:[#allocation8 + $0x8] sm:$0xff] %v62
      %79 = vst [vmem:[#allocation8 + $0x10] sm:$0xff] %v63
      %80 = vst [vmem:[#allocation8 + $0x18] sm:$0xff] %v64
      %81 = vst [vmem:[#allocation8 + $0x20] sm:$0xff] %v65
      %82 = vst [vmem:[#allocation8 + $0x28] sm:$0xff] %v66
      %83 = vst [vmem:[#allocation8 + $0x30] sm:$0xff] %v67
      %84 = vst [vmem:[#allocation8 + $0x38] sm:$0xff] %v68
      %85 = vst [vmem:[#allocation8 + $0x40] sm:$0xff] %v69
      %86 = vst [vmem:[#allocation8 + $0x48] sm:$0xff] %v70
      %87 = vst [vmem:[#allocation8 + $0x50] sm:$0xff] %v71
      %88 = vst [vmem:[#allocation8 + $0x58] sm:$0xff] %v72
      %89 = vst [vmem:[#allocation8 + $0x60] sm:$0xff] %v73
      %90 = vst [vmem:[#allocation8 + $0x68] sm:$0xff] %v74
      %91 = vst [vmem:[#allocation8 + $0x70] sm:$0xff] %v75
      %92 = vst [vmem:[#allocation8 + $0x78] sm:$0xff] %v76
    $region29: #{tpu_custom_call.1} parent=1 // pred_fallthru
      _
    %s93 = smul.u32 0, 128
    %v94 = vld [vmem:[#allocation8] sm:$0xff]
    %v95 = vld [vmem:[#allocation8 + $0x8] sm:$0xff]
    %v96 = vld [vmem:[#allocation8 + $0x10] sm:$0xff]
    %v97 = vld [vmem:[#allocation8 + $0x18] sm:$0xff]
    %v98 = vld [vmem:[#allocation8 + $0x20] sm:$0xff]
    %v99 = vld [vmem:[#allocation8 + $0x28] sm:$0xff]
    %v100 = vld [vmem:[#allocation8 + $0x30] sm:$0xff]
    %v101 = vld [vmem:[#allocation8 + $0x38] sm:$0xff]
    %v102 = vld [vmem:[#allocation8 + $0x40] sm:$0xff]
    %v103 = vld [vmem:[#allocation8 + $0x48] sm:$0xff]
    %v104 = vld [vmem:[#allocation8 + $0x50] sm:$0xff]
    %v105 = vld [vmem:[#allocation8 + $0x58] sm:$0xff]
    %v106 = vld [vmem:[#allocation8 + $0x60] sm:$0xff]
    %v107 = vld [vmem:[#allocation8 + $0x68] sm:$0xff]
    %v108 = vld [vmem:[#allocation8 + $0x70] sm:$0xff]
    %v109 = vld [vmem:[#allocation8 + $0x78] sm:$0xff]
    %v110 = vld [vmem:[#allocation5] sm:$0xf]
    %v111 = vld [vmem:[#allocation5 + $0x4] sm:$0xf]
    %v112 = vld [vmem:[#allocation5 + $0x8] sm:$0xf]
    %v113 = vld [vmem:[#allocation5 + $0xc] sm:$0xf]
    %v114 = vld [vmem:[#allocation5 + $0x10] sm:$0xf]
    %v115 = vld [vmem:[#allocation5 + $0x14] sm:$0xf]
    %v116 = vld [vmem:[#allocation5 + $0x18] sm:$0xf]
    %v117 = vld [vmem:[#allocation5 + $0x1c] sm:$0xf]
    %v118 = vld [vmem:[#allocation5 + $0x20] sm:$0xf]
    %v119 = vld [vmem:[#allocation5 + $0x24] sm:$0xf]
    %v120 = vld [vmem:[#allocation5 + $0x28] sm:$0xf]
    %v121 = vld [vmem:[#allocation5 + $0x2c] sm:$0xf]
    %v122 = vld [vmem:[#allocation5 + $0x30] sm:$0xf]
    %v123 = vld [vmem:[#allocation5 + $0x34] sm:$0xf]
    %v124 = vld [vmem:[#allocation5 + $0x38] sm:$0xf]
    %v125 = vld [vmem:[#allocation5 + $0x3c] sm:$0xf]
    %s126 = sshra.s32 %s93, 3
    %s127 = sand.u32 %s93, 7
    %s128 = smul.addr %s126, 4
    %s129 = scalar_lea.vmem [#allocation2], %s128
    %v130 = vld [vmem:[%s129] sm:$0xf]
    %v131 = vld [vmem:[%s129 + $0x4] sm:$0xf]
    %v132 = vld [vmem:[%s129 + $0x8] sm:$0xf]
    %v133 = vld [vmem:[%s129 + $0xc] sm:$0xf]
    %v134 = vld [vmem:[%s129 + $0x10] sm:$0xf]
    %v135 = vld [vmem:[%s129 + $0x14] sm:$0xf]
    %v136 = vld [vmem:[%s129 + $0x18] sm:$0xf]
    %v137 = vld [vmem:[%s129 + $0x1c] sm:$0xf]
    %v138 = vld [vmem:[%s129 + $0x20] sm:$0xf]
    %v139 = vld [vmem:[%s129 + $0x24] sm:$0xf]
    %v140 = vld [vmem:[%s129 + $0x28] sm:$0xf]
    %v141 = vld [vmem:[%s129 + $0x2c] sm:$0xf]
    %v142 = vld [vmem:[%s129 + $0x30] sm:$0xf]
    %v143 = vld [vmem:[%s129 + $0x34] sm:$0xf]
    %v144 = vld [vmem:[%s129 + $0x38] sm:$0xf]
    %v145 = vld [vmem:[%s129 + $0x3c] sm:$0xf]
    %v162 = vunpack.c.l.b16 %v110
    %v163 = vunpack.c.l.b16 %v111
    %v164 = vunpack.c.l.b16 %v112
    %v165 = vunpack.c.l.b16 %v113
    %v166 = vunpack.c.l.b16 %v114
    %v167 = vunpack.c.l.b16 %v115
    %v168 = vunpack.c.l.b16 %v116
    %v169 = vunpack.c.l.b16 %v117
    %v170 = vunpack.c.l.b16 %v118
    %v171 = vunpack.c.l.b16 %v119
    %v172 = vunpack.c.l.b16 %v120
    %v173 = vunpack.c.l.b16 %v121
    %v174 = vunpack.c.l.b16 %v122
    %v175 = vunpack.c.l.b16 %v123
    %v176 = vunpack.c.l.b16 %v124
    %v177 = vunpack.c.l.b16 %v125
    %v178 = vpack.c.b16 %v163, %v162
    %v179 = vpack.c.b16 %v165, %v164
    %v180 = vpack.c.b16 %v167, %v166
    %v181 = vpack.c.b16 %v169, %v168
    %v182 = vpack.c.b16 %v171, %v170
    %v183 = vpack.c.b16 %v173, %v172
    %v184 = vpack.c.b16 %v175, %v174
    %v185 = vpack.c.b16 %v177, %v176
    %v210 = vunpack.c.l.b16 %v130
    %v211 = vunpack.c.l.b16 %v131
    %v212 = vunpack.c.l.b16 %v132
    %v213 = vunpack.c.l.b16 %v133
    %v214 = vunpack.c.l.b16 %v134
    %v215 = vunpack.c.l.b16 %v135
    %v216 = vunpack.c.l.b16 %v136
    %v217 = vunpack.c.l.b16 %v137
    %v218 = vunpack.c.l.b16 %v138
    %v219 = vunpack.c.l.b16 %v139
    %v220 = vunpack.c.l.b16 %v140
    %v221 = vunpack.c.l.b16 %v141
    %v222 = vunpack.c.l.b16 %v142
    %v223 = vunpack.c.l.b16 %v143
    %v224 = vunpack.c.l.b16 %v144
    %v225 = vunpack.c.l.b16 %v145
    %v226 = vpack.c.b16 %v211, %v210
    %v227 = vpack.c.b16 %v213, %v212
    %v228 = vpack.c.b16 %v215, %v214
    %v229 = vpack.c.b16 %v217, %v216
    %v230 = vpack.c.b16 %v219, %v218
    %v231 = vpack.c.b16 %v221, %v220
    %v232 = vpack.c.b16 %v223, %v222
    %v233 = vpack.c.b16 %v225, %v224
    %242 = vmatprep.subr.bf16.mxu0 0
    %243 = vmatpush1.bf16.msra.mxu0 %v233
    %244 = vmatprep.subr.bf16.mxu0 0
    %245 = vmatpush1.bf16.msra.mxu0 %v232
    %246 = vmatprep.subr.bf16.mxu0 0
    %247 = vmatpush1.bf16.msra.mxu0 %v231
    %248 = vmatprep.subr.bf16.mxu0 0
    %249 = vmatpush1.bf16.msra.mxu0 %v230
    %250 = vmatprep.subr.bf16.mxu0 0
    %251 = vmatpush1.bf16.msra.mxu0 %v229
    %252 = vmatprep.subr.bf16.mxu0 0
    %253 = vmatpush1.bf16.msra.mxu0 %v228
    %254 = vmatprep.subr.bf16.mxu0 0
    %255 = vmatpush1.bf16.msra.mxu0 %v227
    %256 = vmatprep.subr.bf16.mxu0 0
    %257 = vmatpush1.bf16.msra.mxu0 %v226
    %258 = vmatprep.subr.bf16.mxu0 0
    %259 = vmatpush2.bf16.msra.mxu0 0
    %260 = vmatprep.subr.bf16.mxu0 0
    %261 = vmatpush2.bf16.msra.mxu0 0
    %262 = vmatprep.subr.bf16.mxu0 0
    %263 = vmatpush2.bf16.msra.mxu0 0
    %264 = vmatprep.subr.bf16.mxu0 0
    %265 = vmatpush2.bf16.msra.mxu0 0
    %266 = vmatprep.subr.bf16.mxu0 0
    %267 = vmatpush2.bf16.msra.mxu0 0
    %268 = vmatprep.subr.bf16.mxu0 0
    %269 = vmatpush2.bf16.msra.mxu0 0
    %270 = vmatprep.subr.bf16.mxu0 0
    %271 = vmatpush2.bf16.msra.mxu0 0
    %272 = vmatprep.subr.bf16.mxu0 0
    %273 = vmatpush2.bf16.msra.mxu0 0
    %274 = vmatprep.mubr.bf16.mxu0 0
    %275 = vmatmul.mubr.bf16.gmra.mxu0 %v178
    %v276 = vpop.f32.mrf.mxu0
    %v277 = vadd.f32 0.0, %v276
    %v278 = vpop.f32.mrf.mxu0
    %v279 = vpop.f32.mrf.mxu0
    %v280 = vadd.f32 0.0, %v279
    %v281 = vpop.f32.mrf.mxu0
    %282 = vmatprep.mubr.bf16.mxu0 0
    %283 = vmatmul.mubr.bf16.gmra.mxu0 %v179
    %v284 = vpop.f32.mrf.mxu0
    %v285 = vadd.f32 0.0, %v284
    %v286 = vpop.f32.mrf.mxu0
    %v287 = vpop.f32.mrf.mxu0
    %v288 = vadd.f32 0.0, %v287
    %v289 = vpop.f32.mrf.mxu0
    %290 = vmatprep.mubr.bf16.mxu0 0
    %291 = vmatmul.mubr.bf16.gmra.mxu0 %v180
    %v292 = vpop.f32.mrf.mxu0
    %v293 = vadd.f32 0.0, %v292
    %v294 = vpop.f32.mrf.mxu0
    %v295 = vpop.f32.mrf.mxu0
    %v296 = vadd.f32 0.0, %v295
    %v297 = vpop.f32.mrf.mxu0
    %298 = vmatprep.mubr.bf16.mxu0 0
    %299 = vmatmul.mubr.bf16.gmra.mxu0 %v181
    %v300 = vpop.f32.mrf.mxu0
    %v301 = vadd.f32 0.0, %v300
    %v302 = vpop.f32.mrf.mxu0
    %v303 = vpop.f32.mrf.mxu0
    %v304 = vadd.f32 0.0, %v303
    %v305 = vpop.f32.mrf.mxu0
    %306 = vmatprep.mubr.bf16.mxu0 0
    %307 = vmatmul.mubr.bf16.gmra.mxu0 %v182
    %v308 = vpop.f32.mrf.mxu0
    %v309 = vadd.f32 0.0, %v308
    %v310 = vpop.f32.mrf.mxu0
    %v311 = vpop.f32.mrf.mxu0
    %v312 = vadd.f32 0.0, %v311
    %v313 = vpop.f32.mrf.mxu0
    %314 = vmatprep.mubr.bf16.mxu0 0
    %315 = vmatmul.mubr.bf16.gmra.mxu0 %v183
    %v316 = vpop.f32.mrf.mxu0
    %v317 = vadd.f32 0.0, %v316
    %v318 = vpop.f32.mrf.mxu0
    %v319 = vpop.f32.mrf.mxu0
    %v320 = vadd.f32 0.0, %v319
    %v321 = vpop.f32.mrf.mxu0
    %322 = vmatprep.mubr.bf16.mxu0 0
    %323 = vmatmul.mubr.bf16.gmra.mxu0 %v184
    %v324 = vpop.f32.mrf.mxu0
    %v325 = vadd.f32 0.0, %v324
    %v326 = vpop.f32.mrf.mxu0
    %v327 = vpop.f32.mrf.mxu0
    %v328 = vadd.f32 0.0, %v327
    %v329 = vpop.f32.mrf.mxu0
    %330 = vmatprep.mubr.bf16.mxu0 0
    %331 = vmatmul.mubr.bf16.gmra.mxu0 %v185
    %v332 = vpop.f32.mrf.mxu0
    %v333 = vadd.f32 0.0, %v332
    %v334 = vpop.f32.mrf.mxu0
    %v335 = vpop.f32.mrf.mxu0
    %v336 = vadd.f32 0.0, %v335
    %v337 = vpop.f32.mrf.mxu0
    %338 = vdwg.mxu0
    %v339 = vadd.f32 %v94, %v277
    %v340 = vadd.f32 %v95, %v280
    %v341 = vadd.f32 %v96, %v285
    %v342 = vadd.f32 %v97, %v288
    %v343 = vadd.f32 %v98, %v293
    %v344 = vadd.f32 %v99, %v296
    %v345 = vadd.f32 %v100, %v301
    %v346 = vadd.f32 %v101, %v304
    %v347 = vadd.f32 %v102, %v309
    %v348 = vadd.f32 %v103, %v312
    %v349 = vadd.f32 %v104, %v317
    %v350 = vadd.f32 %v105, %v320
    %v351 = vadd.f32 %v106, %v325
    %v352 = vadd.f32 %v107, %v328
    %v353 = vadd.f32 %v108, %v333
    %v354 = vadd.f32 %v109, %v336
    %355 = vst [vmem:[#allocation8] sm:$0xff] %v339
    %356 = vst [vmem:[#allocation8 + $0x8] sm:$0xff] %v340
    %357 = vst [vmem:[#allocation8 + $0x10] sm:$0xff] %v341
    %358 = vst [vmem:[#allocation8 + $0x18] sm:$0xff] %v342
    %359 = vst [vmem:[#allocation8 + $0x20] sm:$0xff] %v343
    %360 = vst [vmem:[#allocation8 + $0x28] sm:$0xff] %v344
    %361 = vst [vmem:[#allocation8 + $0x30] sm:$0xff] %v345
    %362 = vst [vmem:[#allocation8 + $0x38] sm:$0xff] %v346
    %363 = vst [vmem:[#allocation8 + $0x40] sm:$0xff] %v347
    %364 = vst [vmem:[#allocation8 + $0x48] sm:$0xff] %v348
    %365 = vst [vmem:[#allocation8 + $0x50] sm:$0xff] %v349
    %366 = vst [vmem:[#allocation8 + $0x58] sm:$0xff] %v350
    %367 = vst [vmem:[#allocation8 + $0x60] sm:$0xff] %v351
    %368 = vst [vmem:[#allocation8 + $0x68] sm:$0xff] %v352
    %369 = vst [vmem:[#allocation8 + $0x70] sm:$0xff] %v353
    %370 = vst [vmem:[#allocation8 + $0x78] sm:$0xff] %v354
    // Predicated region
    $region30: #{tpu_custom_call.1} parent=1 // pred_check
      _
    $region31: #{tpu_custom_call.1} parent=1 // pred_check_branch
      %372 = sbr.rel (0) target = $region33
    $region32: #{tpu_custom_call.1} parent=1 // pred_region
      %s374 = ssub.s32 2048, 2048
      %375 = vsyncadd [#allocation4], %s374
      %s376 = sshll.u32 [#allocation8], 4
      %s377 = int_to_ptr.vmem [resolvable:$true] %s376
      %382 = dma.vmem_to_hbm [thread:$0]  %s377, 2048, %s3, [#allocation4], 128, 128, 8
    $region33: #{tpu_custom_call.1} parent=1 // pred_fallthru
      _
    // Predicated region
    $region34: #{tpu_custom_call.1} parent=1 // pred_check
      _
    $region35: #{tpu_custom_call.1} parent=1 // pred_check_branch
      %384 = sbr.rel (0) target = $region37
    $region36: #{tpu_custom_call.1} parent=1 // pred_region
      %385 = dma.done [#allocation4], 2048
    $region37: #{tpu_custom_call.1} parent=1 // pred_fallthru
      _
    %386 = vsyncpa [#allocation3], 1
    %387 = vsyncpa [#allocation6], 1
    %388 = vsyncpa [#allocation4], 1

</llo_original>
